<compile_context>
chip_gen: v5e
topology: v5e:2x2
jax: 0.10.0
libtpu: 0.0.40
codegen_flags: <defaults>
</compile_context>

<pallas_src>
import functools

import jax
import jax.numpy as jnp
from jax.experimental import pallas as pl
from jax.experimental.pallas import tpu as pltpu


def _round_up(a: int, b: int) -> int:
    return (a + b - 1) // b * b


# ---------------------------------------------------------------------------
# Fused TemporalBlock kernel:
#   h1 = relu(causal_conv1(x) + b1)
#   y  = relu(causal_conv2(h1) + b2)
#   out= relu(y + (x @ Wd + bd  if downsample else  x))
# ---------------------------------------------------------------------------
def _temporal_block_kernel(*refs, K, dilation, tile_t, halo_pad, has_down):
    if has_down:
        (x_ref, w1_ref, b1_ref, w2_ref, b2_ref, wd_ref, bd_ref,
         o_ref, xw, h1w, acc) = refs
    else:
        x_ref, w1_ref, b1_ref, w2_ref, b2_ref, o_ref, xw, h1w, acc = refs
        wd_ref = bd_ref = None

    i = pl.program_id(1)          # time-tile index (sequential / "arbitrary")
    halo = (K - 1) * dilation
    hp = halo_pad                 # halo rounded up to a sublane multiple
    f32 = jnp.float32

    # ---- halo carries (causal left context), kept entirely in VMEM ----
    if halo > 0:
        @pl.when(i == 0)
        def _():
            # Causal zero padding of x (for conv1) and of h1 (for conv2).
            xw[pl.ds(0, hp)] = jnp.zeros((hp, xw.shape[-1]), xw.dtype)
            h1w[pl.ds(0, hp)] = jnp.zeros((hp, h1w.shape[-1]), h1w.dtype)

        @pl.when(i > 0)
        def _():
            # Carry the last `halo` rows of the previous tile (tile_t >= halo).
            xw[pl.ds(hp - halo, halo)] = xw[pl.ds(hp + tile_t - halo, halo)]
            h1w[pl.ds(hp - halo, halo)] = h1w[pl.ds(hp + tile_t - halo, halo)]

    # ---- stage the current (auto-pipelined) x tile after the halo ----
    xw[pl.ds(hp, tile_t)] = x_ref[0]

    # ---- conv1 + bias + ReLU  (K shifted MXU matmuls, f32 accumulate) ----
    acc[...] = jnp.zeros_like(acc)
    for k in range(K):            # static unroll, K is small
        acc[...] += jnp.dot(xw[pl.ds(hp - halo + k * dilation, tile_t)],
                            w1_ref[k], preferred_element_type=f32)
    h1w[pl.ds(hp, tile_t)] = jnp.maximum(
        acc[...] + b1_ref[...].astype(f32), 0.0).astype(h1w.dtype)

    # ---- conv2 + bias + ReLU ----
    acc[...] = jnp.zeros_like(acc)
    for k in range(K):
        acc[...] += jnp.dot(h1w[pl.ds(hp - halo + k * dilation, tile_t)],
                            w2_ref[k], preferred_element_type=f32)
    acc[...] = jnp.maximum(acc[...] + b2_ref[...].astype(f32), 0.0)

    # ---- residual (identity or fused 1x1 downsample) + final ReLU ----
    if has_down:
        acc[...] += jnp.dot(x_ref[0], wd_ref[...], preferred_element_type=f32)
        acc[...] += bd_ref[...].astype(f32)
    else:
        acc[...] += x_ref[0].astype(f32)
    o_ref[0] = jnp.maximum(acc[...], 0.0).astype(o_ref.dtype)


def _temporal_block(x, w1, b1, w2, b2, wd, bd, *, dilation, tile_t):
    """One fused TemporalBlock.

    x:  [B, T, Cin_p]   (T multiple of tile_t, Cin_p multiple of 128)
    w1: [K, Cin_p, Cout_p]   w2: [K, Cout_p, Cout_p]
    b1, b2: [Cout_p]
    wd: [Cin_p, Cout_p] or None (identity residual)   bd: [Cout_p] or None
    returns [B, T, Cout_p]
    """
    B, T, cin = x.shape
    K, _, cout = w1.shape
    halo = (K - 1) * dilation
    hp = _round_up(halo, 8) if halo else 0
    assert T % tile_t == 0 and tile_t % 8 == 0 and tile_t >= halo
    n_t = T // tile_t
    has_down = wd is not None
    dt = x.dtype

    in_specs = [
        pl.BlockSpec((1, tile_t, cin), lambda b, i: (b, i, 0)),   # x tile (pipelined)
        pl.BlockSpec((K, cin, cout), lambda b, i: (0, 0, 0)),     # W1 (resident)
        pl.BlockSpec((1, cout), lambda b, i: (0, 0)),             # b1
        pl.BlockSpec((K, cout, cout), lambda b, i: (0, 0, 0)),    # W2 (resident)
        pl.BlockSpec((1, cout), lambda b, i: (0, 0)),             # b2
    ]
    inputs = [x, w1.astype(dt), b1.reshape(1, cout).astype(jnp.float32),
              w2.astype(dt), b2.reshape(1, cout).astype(jnp.float32)]
    if has_down:
        in_specs += [pl.BlockSpec((cin, cout), lambda b, i: (0, 0)),
                     pl.BlockSpec((1, cout), lambda b, i: (0, 0))]
        inputs += [wd.astype(dt), bd.reshape(1, cout).astype(jnp.float32)]

    kernel = functools.partial(_temporal_block_kernel, K=K, dilation=dilation,
                               tile_t=tile_t, halo_pad=hp, has_down=has_down)

    # VMEM budget (double-buffered tiles + resident weights + scratch).
    itm = jnp.dtype(dt).itemsize
    w_bytes = (K * cin * cout + K * cout * cout
               + (cin * cout if has_down else 0)) * itm
    vmem_est = (2 * tile_t * (cin + cout) * itm           # in/out tiles (dbl-buf)
                + 2 * w_bytes + 8 * cout * 4              # weights + biases
                + (hp + tile_t) * (cin + cout) * itm      # xw + h1w scratch
                + tile_t * cout * 4)                      # f32 accumulator
    vmem_limit = int(min(max(2 * vmem_est, 32 * 1024 * 1024), 100 * 1024 * 1024))

    return pl.pallas_call(
        kernel,
        out_shape=jax.ShapeDtypeStruct((B, T, cout), dt),
        grid_spec=pltpu.PrefetchScalarGridSpec(
            num_scalar_prefetch=0,
            grid=(B, n_t),
            in_specs=in_specs,
            out_specs=pl.BlockSpec((1, tile_t, cout), lambda b, i: (b, i, 0)),
            scratch_shapes=[
                pltpu.VMEM((hp + tile_t, cin), dt),        # x window (halo carry)
                pltpu.VMEM((hp + tile_t, cout), dt),       # h1 window (halo carry)
                pltpu.VMEM((tile_t, cout), jnp.float32),   # f32 accumulator
            ],
        ),
        compiler_params=pltpu.CompilerParams(
            # Time axis must stay sequential for the VMEM halo carries;
            # the batch axis shards across megacore TCs (v7x).
            dimension_semantics=("parallel", "arbitrary"),
            vmem_limit_bytes=vmem_limit,
        ),
    )(*inputs)


# ---------------------------------------------------------------------------
# TemporalConvNet wrapper (weight_norm folding, channel padding, stacking)
# ---------------------------------------------------------------------------
def _weight_norm(v, g):
    """PyTorch weight_norm(conv.weight, dim=1): v [C_out, C_in, K], g [1, C_in, 1]."""
    norm = jnp.sqrt(jnp.sum(v * v, axis=(0, 2), keepdims=True))
    return g * v / norm


def _to_kio(w_oik):
    """[C_out, C_in, K] -> [K, C_in, C_out] (kernel layout)."""
    return jnp.transpose(w_oik, (2, 1, 0))


def init_tcn_params(key, num_inputs, num_channels, kernel_size):
    params = []
    c_in = num_inputs
    for c_out in num_channels:
        key, k1, k2, k3, k4, k5, k6, k7, k8 = jax.random.split(key, 9)
        lp = {
            "v1": 0.01 * jax.random.normal(k1, (c_out, c_in, kernel_size), jnp.float32),
            "g1": 1.0 + 0.1 * jax.random.normal(k2, (1, c_in, 1), jnp.float32),
            "b1": 0.1 * jax.random.normal(k3, (c_out,), jnp.float32),
            "v2": 0.01 * jax.random.normal(k4, (c_out, c_out, kernel_size), jnp.float32),
            "g2": 1.0 + 0.1 * jax.random.normal(k5, (1, c_out, 1), jnp.float32),
            "b2": 0.1 * jax.random.normal(k6, (c_out,), jnp.float32),
        }
        if c_in != c_out:   # downsample 1x1 conv (no weight_norm)
            lp["wd"] = 0.01 * jax.random.normal(k7, (c_out, c_in, 1), jnp.float32)
            lp["bd"] = 0.1 * jax.random.normal(k8, (c_out,), jnp.float32)
        params.append(lp)
        c_in = c_out
    return params


def temporal_conv_net(x, params, kernel_size, *, base_tile=512, lane=128,
                      act_dtype=None):
    """Forward pass of TemporalConvNet (eval mode). x: [B, T, D] -> [B, T, C_last]."""
    if not params:
        return x
    B, T, D = x.shape
    dt = x.dtype if act_dtype is None else act_dtype
    nlayers = len(params)

    # One tile size for the whole stack: >= the deepest dilation's halo,
    # multiple of 8, and no larger than needed for short sequences.
    halo_max = (kernel_size - 1) * (2 ** (nlayers - 1))
    tile = min(base_tile, _round_up(T, 8))
    tile = _round_up(max(tile, halo_max, 8), 8)
    T_pad = _round_up(T, tile)

    # Pad channels to a lane multiple once; pad T to a tile multiple once.
    # Causal convs never read the future, so the first T rows are unaffected.
    c_in = D
    c_in_p = _round_up(max(D, lane), lane)
    h = jnp.pad(x, ((0, 0), (0, T_pad - T), (0, c_in_p - D))).astype(dt)

    c_out = D
    for i, lp in enumerate(params):
        dilation = 2 ** i
        w1 = _to_kio(_weight_norm(lp["v1"], lp["g1"]))   # [K, c_in, c_out]
        w2 = _to_kio(_weight_norm(lp["v2"], lp["g2"]))   # [K, c_out, c_out]
        c_out = w1.shape[-1]
        c_out_p = _round_up(max(c_out, lane), lane)

        w1p = jnp.pad(w1, ((0, 0), (0, c_in_p - c_in), (0, c_out_p - c_out)))
        w2p = jnp.pad(w2, ((0, 0), (0, c_out_p - c_out), (0, c_out_p - c_out)))
        b1p = jnp.pad(lp["b1"], (0, c_out_p - c_out))
        b2p = jnp.pad(lp["b2"], (0, c_out_p - c_out))
        if "wd" in lp:
            wd = _to_kio(lp["wd"])[0]                    # [c_in, c_out]
            wdp = jnp.pad(wd, ((0, c_in_p - c_in), (0, c_out_p - c_out)))
            bdp = jnp.pad(lp["bd"], (0, c_out_p - c_out))
        else:
            wdp = bdp = None

        # TODO(synk): training-mode dropout (p=0.2) not implemented; eval only.
        h = _temporal_block(h, w1p, b1p, w2p, b2p, wdp, bdp,
                            dilation=dilation, tile_t=tile)
        c_in, c_in_p = c_out, c_out_p

    return h[:, :T, :c_out]


# ---------------------------------------------------------------------------
# Pure-JAX reference (mirrors the PyTorch forward exactly, eval mode)
# ---------------------------------------------------------------------------
def _conv_ref(x, w_kio, bias, dilation, relu, residual=None):
    B, T, _ = x.shape
    K = w_kio.shape[0]
    p = (K - 1) * dilation
    xp = jnp.pad(x, ((0, 0), (p, 0), (0, 0)))
    y = bias[None, None, :] + sum(
        jnp.einsum("btd,do->bto", xp[:, k * dilation:k * dilation + T, :], w_kio[k])
        for k in range(K))
    if relu:
        y = jnp.maximum(y, 0.0)
    if residual is not None:
        y = jnp.maximum(y + residual, 0.0)
    return y


def temporal_conv_net_ref(x, params, kernel_size):
    h = x
    for i, lp in enumerate(params):
        d = 2 ** i
        w1 = _to_kio(_weight_norm(lp["v1"], lp["g1"]))
        w2 = _to_kio(_weight_norm(lp["v2"], lp["g2"]))
        h1 = _conv_ref(h, w1, lp["b1"], d, relu=True)
        if "wd" in lp:
            res = _conv_ref(h, _to_kio(lp["wd"]), lp["bd"], 1, relu=False)
        else:
            res = h
        h = _conv_ref(h1, w2, lp["b2"], d, relu=True, residual=res)
    return h


if __name__ == "__main__":
    key = jax.random.PRNGKey(0)
    B, T, D_in = 2, 20, 8
    num_channels = (16, 16, 32)     # layer 1 exercises the identity-residual path
    kernel_size = 3

    k_x, k_p = jax.random.split(key)
    x = jax.random.normal(k_x, (B, T, D_in), dtype=jnp.float32)   # [B, T, D]
    params = init_tcn_params(k_p, D_in, num_channels, kernel_size)

    # base_tile=8 forces multiple time tiles so the VMEM halo-carry path runs.
    out = temporal_conv_net(x, params, kernel_size, base_tile=8)
    out = jax.block_until_ready(out)

    ref = temporal_conv_net_ref(x, params, kernel_size)
    assert out.shape == (B, T, num_channels[-1]), out.shape
    max_err = float(jnp.max(jnp.abs(out - ref)))
    assert jnp.allclose(out, ref, rtol=1e-3, atol=1e-3), f"max abs err {max_err}"

    print("KERNEL_OK")
</pallas_src>

<mosaic_0001>
module attributes {stable_mosaic.version = 11 : i64} {
  func.func @_temporal_block_kernel(%arg0: i32, %arg1: i32, %arg2: memref<1x8x128xf32, #tpu.memory_space<vmem>>, %arg3: memref<3x128x128xf32, #tpu.memory_space<vmem>>, %arg4: memref<1x128xf32, #tpu.memory_space<vmem>>, %arg5: memref<3x128x128xf32, #tpu.memory_space<vmem>>, %arg6: memref<1x128xf32, #tpu.memory_space<vmem>>, %arg7: memref<128x128xf32, #tpu.memory_space<vmem>>, %arg8: memref<1x128xf32, #tpu.memory_space<vmem>>, %arg9: memref<1x8x128xf32, #tpu.memory_space<vmem>>, %arg10: memref<16x128xf32, #tpu.memory_space<vmem>>, %arg11: memref<16x128xf32, #tpu.memory_space<vmem>>, %arg12: memref<8x128xf32, #tpu.memory_space<vmem>>) attributes {dimension_semantics = [#tpu.dimension_semantics<parallel>, #tpu.dimension_semantics<arbitrary>], iteration_bounds = array<i64: 2, 3>, scalar_prefetch = 0 : i64, scratch_operands = 3 : i64, tpu.core_type = #tpu.core_type<tc>, window_params = [{transform_indices = @transform_0, window_bounds = array<i64: 1, 8, 128>}, {pipeline_mode = #tpu.pipeline_mode<synchronous>, transform_indices = @transform_1, window_bounds = array<i64: 3, 128, 128>}, {pipeline_mode = #tpu.pipeline_mode<synchronous>, transform_indices = @transform_2, window_bounds = array<i64: 1, 128>}, {pipeline_mode = #tpu.pipeline_mode<synchronous>, transform_indices = @transform_3, window_bounds = array<i64: 3, 128, 128>}, {pipeline_mode = #tpu.pipeline_mode<synchronous>, transform_indices = @transform_4, window_bounds = array<i64: 1, 128>}, {pipeline_mode = #tpu.pipeline_mode<synchronous>, transform_indices = @transform_5, window_bounds = array<i64: 128, 128>}, {pipeline_mode = #tpu.pipeline_mode<synchronous>, transform_indices = @transform_6, window_bounds = array<i64: 1, 128>}, {transform_indices = @transform_7, window_bounds = array<i64: 1, 8, 128>}]} {
    %c0_i32 = arith.constant 0 : i32
    %0 = arith.cmpi eq, %arg1, %c0_i32 : i32
    %1 = arith.extui %0 : i1 to i32
    %c0_i32_0 = arith.constant 0 : i32
    %2 = arith.cmpi ne, %1, %c0_i32_0 : i32
    scf.if %2 {
      %cst_103 = arith.constant 0.000000e+00 : f32
      %87 = vector.broadcast %cst_103 : f32 to vector<8x128xf32>
      %c0_104 = arith.constant 0 : index
      %c0_105 = arith.constant 0 : index
      %88 = vector.load %arg10[%c0_104, %c0_105] : memref<16x128xf32, #tpu.memory_space<vmem>>, vector<8x128xf32>
      tpu.vector_store %arg10[%c0_104, %c0_105], %87 {strides = array<i32>} : memref<16x128xf32, #tpu.memory_space<vmem>>, vector<8x128xf32>,
      %cst_106 = arith.constant 0.000000e+00 : f32
      %89 = vector.broadcast %cst_106 : f32 to vector<8x128xf32>
      %c0_107 = arith.constant 0 : index
      %c0_108 = arith.constant 0 : index
      %90 = vector.load %arg11[%c0_107, %c0_108] : memref<16x128xf32, #tpu.memory_space<vmem>>, vector<8x128xf32>
      tpu.vector_store %arg11[%c0_107, %c0_108], %89 {strides = array<i32>} : memref<16x128xf32, #tpu.memory_space<vmem>>, vector<8x128xf32>,
    } else {
    }
    %c0_i32_1 = arith.constant 0 : i32
    %3 = arith.cmpi sgt, %arg1, %c0_i32_1 : i32
    %4 = arith.extui %3 : i1 to i32
    %c0_i32_2 = arith.constant 0 : i32
    %5 = arith.cmpi ne, %4, %c0_i32_2 : i32
    scf.if %5 {
      %c14 = arith.constant 14 : index
      %c0_103 = arith.constant 0 : index
      %87 = vector.load %arg10[%c14, %c0_103] : memref<16x128xf32, #tpu.memory_space<vmem>>, vector<2x128xf32>
      %c6_104 = arith.constant 6 : index
      %c0_105 = arith.constant 0 : index
      %88 = vector.load %arg10[%c6_104, %c0_105] : memref<16x128xf32, #tpu.memory_space<vmem>>, vector<2x128xf32>
      tpu.vector_store %arg10[%c6_104, %c0_105], %87 {strides = array<i32>} : memref<16x128xf32, #tpu.memory_space<vmem>>, vector<2x128xf32>,
      %c14_106 = arith.constant 14 : index
      %c0_107 = arith.constant 0 : index
      %89 = vector.load %arg11[%c14_106, %c0_107] : memref<16x128xf32, #tpu.memory_space<vmem>>, vector<2x128xf32>
      %c6_108 = arith.constant 6 : index
      %c0_109 = arith.constant 0 : index
      %90 = vector.load %arg11[%c6_108, %c0_109] : memref<16x128xf32, #tpu.memory_space<vmem>>, vector<2x128xf32>
      tpu.vector_store %arg11[%c6_108, %c0_109], %89 {strides = array<i32>} : memref<16x128xf32, #tpu.memory_space<vmem>>, vector<2x128xf32>,
    } else {
    }
    %c0 = arith.constant 0 : index
    %c0_3 = arith.constant 0 : index
    %c0_4 = arith.constant 0 : index
    %6 = vector.load %arg2[%c0, %c0_3, %c0_4] : memref<1x8x128xf32, #tpu.memory_space<vmem>>, vector<1x8x128xf32>
    %7 = vector.shape_cast %6 : vector<1x8x128xf32> to vector<8x128xf32>
    %c8 = arith.constant 8 : index
    %c0_5 = arith.constant 0 : index
    %8 = vector.load %arg10[%c8, %c0_5] : memref<16x128xf32, #tpu.memory_space<vmem>>, vector<8x128xf32>
    tpu.vector_store %arg10[%c8, %c0_5], %7 {strides = array<i32>} : memref<16x128xf32, #tpu.memory_space<vmem>>, vector<8x128xf32>,
    %cst = arith.constant 0.000000e+00 : f32
    %9 = vector.broadcast %cst : f32 to vector<8x128xf32>
    %c0_6 = arith.constant 0 : index
    %c0_7 = arith.constant 0 : index
    %10 = vector.load %arg12[%c0_6, %c0_7] : memref<8x128xf32, #tpu.memory_space<vmem>>, vector<8x128xf32>
    tpu.vector_store %arg12[%c0_6, %c0_7], %9 {strides = array<i32>} : memref<8x128xf32, #tpu.memory_space<vmem>>, vector<8x128xf32>,
    %c0_8 = arith.constant 0 : index
    %c0_9 = arith.constant 0 : index
    %11 = vector.load %arg12[%c0_8, %c0_9] : memref<8x128xf32, #tpu.memory_space<vmem>>, vector<8x128xf32>
    %c6 = arith.constant 6 : index
    %c0_10 = arith.constant 0 : index
    %12 = vector.load %arg10[%c6, %c0_10] : memref<16x128xf32, #tpu.memory_space<vmem>>, vector<8x128xf32>
    %c0_11 = arith.constant 0 : index
    %c0_12 = arith.constant 0 : index
    %c0_13 = arith.constant 0 : index
    %13 = vector.load %arg3[%c0_11, %c0_12, %c0_13] : memref<3x128x128xf32, #tpu.memory_space<vmem>>, vector<1x128x128xf32>
    %14 = vector.shape_cast %13 : vector<1x128x128xf32> to vector<128x128xf32>
    %cst_14 = arith.constant dense<0.000000e+00> : vector<8x128xf32>
    %15 = tpu.matmul %12, %14, %cst_14 {dimension_numbers = #tpu.dot_dimension_numbers<[1], [0], [0], [1], [0, 0, 1, 1], [], []>} : vector<8x128xf32>, vector<128x128xf32>, vector<8x128xf32> -> vector<8x128xf32>
    %16 = arith.addf %11, %15 : vector<8x128xf32>
    %c0_15 = arith.constant 0 : index
    %c0_16 = arith.constant 0 : index
    %17 = vector.load %arg12[%c0_15, %c0_16] : memref<8x128xf32, #tpu.memory_space<vmem>>, vector<8x128xf32>
    tpu.vector_store %arg12[%c0_15, %c0_16], %16 {strides = array<i32>} : memref<8x128xf32, #tpu.memory_space<vmem>>, vector<8x128xf32>,
    %c0_17 = arith.constant 0 : index
    %c0_18 = arith.constant 0 : index
    %18 = vector.load %arg12[%c0_17, %c0_18] : memref<8x128xf32, #tpu.memory_space<vmem>>, vector<8x128xf32>
    %c7 = arith.constant 7 : index
    %c0_19 = arith.constant 0 : index
    %19 = vector.load %arg10[%c7, %c0_19] : memref<16x128xf32, #tpu.memory_space<vmem>>, vector<8x128xf32>
    %c1 = arith.constant 1 : index
    %c0_20 = arith.constant 0 : index
    %c0_21 = arith.constant 0 : index
    %20 = vector.load %arg3[%c1, %c0_20, %c0_21] : memref<3x128x128xf32, #tpu.memory_space<vmem>>, vector<1x128x128xf32>
    %21 = vector.shape_cast %20 : vector<1x128x128xf32> to vector<128x128xf32>
    %cst_22 = arith.constant dense<0.000000e+00> : vector<8x128xf32>
    %22 = tpu.matmul %19, %21, %cst_22 {dimension_numbers = #tpu.dot_dimension_numbers<[1], [0], [0], [1], [0, 0, 1, 1], [], []>} : vector<8x128xf32>, vector<128x128xf32>, vector<8x128xf32> -> vector<8x128xf32>
    %23 = arith.addf %18, %22 : vector<8x128xf32>
    %c0_23 = arith.constant 0 : index
    %c0_24 = arith.constant 0 : index
    %24 = vector.load %arg12[%c0_23, %c0_24] : memref<8x128xf32, #tpu.memory_space<vmem>>, vector<8x128xf32>
    tpu.vector_store %arg12[%c0_23, %c0_24], %23 {strides = array<i32>} : memref<8x128xf32, #tpu.memory_space<vmem>>, vector<8x128xf32>,
    %c0_25 = arith.constant 0 : index
    %c0_26 = arith.constant 0 : index
    %25 = vector.load %arg12[%c0_25, %c0_26] : memref<8x128xf32, #tpu.memory_space<vmem>>, vector<8x128xf32>
    %c8_27 = arith.constant 8 : index
    %c0_28 = arith.constant 0 : index
    %26 = vector.load %arg10[%c8_27, %c0_28] : memref<16x128xf32, #tpu.memory_space<vmem>>, vector<8x128xf32>
    %c2 = arith.constant 2 : index
    %c0_29 = arith.constant 0 : index
    %c0_30 = arith.constant 0 : index
    %27 = vector.load %arg3[%c2, %c0_29, %c0_30] : memref<3x128x128xf32, #tpu.memory_space<vmem>>, vector<1x128x128xf32>
    %28 = vector.shape_cast %27 : vector<1x128x128xf32> to vector<128x128xf32>
    %cst_31 = arith.constant dense<0.000000e+00> : vector<8x128xf32>
    %29 = tpu.matmul %26, %28, %cst_31 {dimension_numbers = #tpu.dot_dimension_numbers<[1], [0], [0], [1], [0, 0, 1, 1], [], []>} : vector<8x128xf32>, vector<128x128xf32>, vector<8x128xf32> -> vector<8x128xf32>
    %30 = arith.addf %25, %29 : vector<8x128xf32>
    %c0_32 = arith.constant 0 : index
    %c0_33 = arith.constant 0 : index
    %31 = vector.load %arg12[%c0_32, %c0_33] : memref<8x128xf32, #tpu.memory_space<vmem>>, vector<8x128xf32>
    tpu.vector_store %arg12[%c0_32, %c0_33], %30 {strides = array<i32>} : memref<8x128xf32, #tpu.memory_space<vmem>>, vector<8x128xf32>,
    %c0_34 = arith.constant 0 : index
    %c0_35 = arith.constant 0 : index
    %32 = vector.load %arg12[%c0_34, %c0_35] : memref<8x128xf32, #tpu.memory_space<vmem>>, vector<8x128xf32>
    %c0_36 = arith.constant 0 : index
    %c0_37 = arith.constant 0 : index
    %33 = vector.load %arg4[%c0_36, %c0_37] : memref<1x128xf32, #tpu.memory_space<vmem>>, vector<1x128xf32>
    %34 = vector.broadcast %33 : vector<1x128xf32> to vector<8x128xf32>
    %35 = arith.addf %32, %34 : vector<8x128xf32>
    %cst_38 = arith.constant 0.000000e+00 : f32
    %36 = vector.broadcast %cst_38 : f32 to vector<8x128xf32>
    %37 = arith.maximumf %35, %36 : vector<8x128xf32>
    %c8_39 = arith.constant 8 : index
    %c0_40 = arith.constant 0 : index
    %38 = vector.load %arg11[%c8_39, %c0_40] : memref<16x128xf32, #tpu.memory_space<vmem>>, vector<8x128xf32>
    tpu.vector_store %arg11[%c8_39, %c0_40], %37 {strides = array<i32>} : memref<16x128xf32, #tpu.memory_space<vmem>>, vector<8x128xf32>,
    %cst_41 = arith.constant 0.000000e+00 : f32
    %39 = vector.broadcast %cst_41 : f32 to vector<8x128xf32>
    %c0_42 = arith.constant 0 : index
    %c0_43 = arith.constant 0 : index
    %40 = vector.load %arg12[%c0_42, %c0_43] : memref<8x128xf32, #tpu.memory_space<vmem>>, vector<8x128xf32>
    tpu.vector_store %arg12[%c0_42, %c0_43], %39 {strides = array<i32>} : memref<8x128xf32, #tpu.memory_space<vmem>>, vector<8x128xf32>,
    %c0_44 = arith.constant 0 : index
    %c0_45 = arith.constant 0 : index
    %41 = vector.load %arg12[%c0_44, %c0_45] : memref<8x128xf32, #tpu.memory_space<vmem>>, vector<8x128xf32>
    %c6_46 = arith.constant 6 : index
    %c0_47 = arith.constant 0 : index
    %42 = vector.load %arg11[%c6_46, %c0_47] : memref<16x128xf32, #tpu.memory_space<vmem>>, vector<8x128xf32>
    %c0_48 = arith.constant 0 : index
    %c0_49 = arith.constant 0 : index
    %c0_50 = arith.constant 0 : index
    %43 = vector.load %arg5[%c0_48, %c0_49, %c0_50] : memref<3x128x128xf32, #tpu.memory_space<vmem>>, vector<1x128x128xf32>
    %44 = vector.shape_cast %43 : vector<1x128x128xf32> to vector<128x128xf32>
    %cst_51 = arith.constant dense<0.000000e+00> : vector<8x128xf32>
    %45 = tpu.matmul %42, %44, %cst_51 {dimension_numbers = #tpu.dot_dimension_numbers<[1], [0], [0], [1], [0, 0, 1, 1], [], []>} : vector<8x128xf32>, vector<128x128xf32>, vector<8x128xf32> -> vector<8x128xf32>
    %46 = arith.addf %41, %45 : vector<8x128xf32>
    %c0_52 = arith.constant 0 : index
    %c0_53 = arith.constant 0 : index
    %47 = vector.load %arg12[%c0_52, %c0_53] : memref<8x128xf32, #tpu.memory_space<vmem>>, vector<8x128xf32>
    tpu.vector_store %arg12[%c0_52, %c0_53], %46 {strides = array<i32>} : memref<8x128xf32, #tpu.memory_space<vmem>>, vector<8x128xf32>,
    %c0_54 = arith.constant 0 : index
    %c0_55 = arith.constant 0 : index
    %48 = vector.load %arg12[%c0_54, %c0_55] : memref<8x128xf32, #tpu.memory_space<vmem>>, vector<8x128xf32>
    %c7_56 = arith.constant 7 : index
    %c0_57 = arith.constant 0 : index
    %49 = vector.load %arg11[%c7_56, %c0_57] : memref<16x128xf32, #tpu.memory_space<vmem>>, vector<8x128xf32>
    %c1_58 = arith.constant 1 : index
    %c0_59 = arith.constant 0 : index
    %c0_60 = arith.constant 0 : index
    %50 = vector.load %arg5[%c1_58, %c0_59, %c0_60] : memref<3x128x128xf32, #tpu.memory_space<vmem>>, vector<1x128x128xf32>
    %51 = vector.shape_cast %50 : vector<1x128x128xf32> to vector<128x128xf32>
    %cst_61 = arith.constant dense<0.000000e+00> : vector<8x128xf32>
    %52 = tpu.matmul %49, %51, %cst_61 {dimension_numbers = #tpu.dot_dimension_numbers<[1], [0], [0], [1], [0, 0, 1, 1], [], []>} : vector<8x128xf32>, vector<128x128xf32>, vector<8x128xf32> -> vector<8x128xf32>
    %53 = arith.addf %48, %52 : vector<8x128xf32>
    %c0_62 = arith.constant 0 : index
    %c0_63 = arith.constant 0 : index
    %54 = vector.load %arg12[%c0_62, %c0_63] : memref<8x128xf32, #tpu.memory_space<vmem>>, vector<8x128xf32>
    tpu.vector_store %arg12[%c0_62, %c0_63], %53 {strides = array<i32>} : memref<8x128xf32, #tpu.memory_space<vmem>>, vector<8x128xf32>,
    %c0_64 = arith.constant 0 : index
    %c0_65 = arith.constant 0 : index
    %55 = vector.load %arg12[%c0_64, %c0_65] : memref<8x128xf32, #tpu.memory_space<vmem>>, vector<8x128xf32>
    %c8_66 = arith.constant 8 : index
    %c0_67 = arith.constant 0 : index
    %56 = vector.load %arg11[%c8_66, %c0_67] : memref<16x128xf32, #tpu.memory_space<vmem>>, vector<8x128xf32>
    %c2_68 = arith.constant 2 : index
    %c0_69 = arith.constant 0 : index
    %c0_70 = arith.constant 0 : index
    %57 = vector.load %arg5[%c2_68, %c0_69, %c0_70] : memref<3x128x128xf32, #tpu.memory_space<vmem>>, vector<1x128x128xf32>
    %58 = vector.shape_cast %57 : vector<1x128x128xf32> to vector<128x128xf32>
    %cst_71 = arith.constant dense<0.000000e+00> : vector<8x128xf32>
    %59 = tpu.matmul %56, %58, %cst_71 {dimension_numbers = #tpu.dot_dimension_numbers<[1], [0], [0], [1], [0, 0, 1, 1], [], []>} : vector<8x128xf32>, vector<128x128xf32>, vector<8x128xf32> -> vector<8x128xf32>
    %60 = arith.addf %55, %59 : vector<8x128xf32>
    %c0_72 = arith.constant 0 : index
    %c0_73 = arith.constant 0 : index
    %61 = vector.load %arg12[%c0_72, %c0_73] : memref<8x128xf32, #tpu.memory_space<vmem>>, vector<8x128xf32>
    tpu.vector_store %arg12[%c0_72, %c0_73], %60 {strides = array<i32>} : memref<8x128xf32, #tpu.memory_space<vmem>>, vector<8x128xf32>,
    %c0_74 = arith.constant 0 : index
    %c0_75 = arith.constant 0 : index
    %62 = vector.load %arg12[%c0_74, %c0_75] : memref<8x128xf32, #tpu.memory_space<vmem>>, vector<8x128xf32>
    %c0_76 = arith.constant 0 : index
    %c0_77 = arith.constant 0 : index
    %63 = vector.load %arg6[%c0_76, %c0_77] : memref<1x128xf32, #tpu.memory_space<vmem>>, vector<1x128xf32>
    %64 = vector.broadcast %63 : vector<1x128xf32> to vector<8x128xf32>
    %65 = arith.addf %62, %64 : vector<8x128xf32>
    %cst_78 = arith.constant 0.000000e+00 : f32
    %66 = vector.broadcast %cst_78 : f32 to vector<8x128xf32>
    %67 = arith.maximumf %65, %66 : vector<8x128xf32>
    %c0_79 = arith.constant 0 : index
    %c0_80 = arith.constant 0 : index
    %68 = vector.load %arg12[%c0_79, %c0_80] : memref<8x128xf32, #tpu.memory_space<vmem>>, vector<8x128xf32>
    tpu.vector_store %arg12[%c0_79, %c0_80], %67 {strides = array<i32>} : memref<8x128xf32, #tpu.memory_space<vmem>>, vector<8x128xf32>,
    %c0_81 = arith.constant 0 : index
    %c0_82 = arith.constant 0 : index
    %69 = vector.load %arg12[%c0_81, %c0_82] : memref<8x128xf32, #tpu.memory_space<vmem>>, vector<8x128xf32>
    %c0_83 = arith.constant 0 : index
    %c0_84 = arith.constant 0 : index
    %c0_85 = arith.constant 0 : index
    %70 = vector.load %arg2[%c0_83, %c0_84, %c0_85] : memref<1x8x128xf32, #tpu.memory_space<vmem>>, vector<1x8x128xf32>
    %71 = vector.shape_cast %70 : vector<1x8x128xf32> to vector<8x128xf32>
    %c0_86 = arith.constant 0 : index
    %c0_87 = arith.constant 0 : index
    %72 = vector.load %arg7[%c0_86, %c0_87] : memref<128x128xf32, #tpu.memory_space<vmem>>, vector<128x128xf32>
    %cst_88 = arith.constant dense<0.000000e+00> : vector<8x128xf32>
    %73 = tpu.matmul %71, %72, %cst_88 {dimension_numbers = #tpu.dot_dimension_numbers<[1], [0], [0], [1], [0, 0, 1, 1], [], []>} : vector<8x128xf32>, vector<128x128xf32>, vector<8x128xf32> -> vector<8x128xf32>
    %74 = arith.addf %69, %73 : vector<8x128xf32>
    %c0_89 = arith.constant 0 : index
    %c0_90 = arith.constant 0 : index
    %75 = vector.load %arg12[%c0_89, %c0_90] : memref<8x128xf32, #tpu.memory_space<vmem>>, vector<8x128xf32>
    tpu.vector_store %arg12[%c0_89, %c0_90], %74 {strides = array<i32>} : memref<8x128xf32, #tpu.memory_space<vmem>>, vector<8x128xf32>,
    %c0_91 = arith.constant 0 : index
    %c0_92 = arith.constant 0 : index
    %76 = vector.load %arg12[%c0_91, %c0_92] : memref<8x128xf32, #tpu.memory_space<vmem>>, vector<8x128xf32>
    %c0_93 = arith.constant 0 : index
    %c0_94 = arith.constant 0 : index
    %77 = vector.load %arg8[%c0_93, %c0_94] : memref<1x128xf32, #tpu.memory_space<vmem>>, vector<1x128xf32>
    %78 = vector.broadcast %77 : vector<1x128xf32> to vector<8x128xf32>
    %79 = arith.addf %76, %78 : vector<8x128xf32>
    %c0_95 = arith.constant 0 : index
    %c0_96 = arith.constant 0 : index
    %80 = vector.load %arg12[%c0_95, %c0_96] : memref<8x128xf32, #tpu.memory_space<vmem>>, vector<8x128xf32>
    tpu.vector_store %arg12[%c0_95, %c0_96], %79 {strides = array<i32>} : memref<8x128xf32, #tpu.memory_space<vmem>>, vector<8x128xf32>,
    %c0_97 = arith.constant 0 : index
    %c0_98 = arith.constant 0 : index
    %81 = vector.load %arg12[%c0_97, %c0_98] : memref<8x128xf32, #tpu.memory_space<vmem>>, vector<8x128xf32>
    %cst_99 = arith.constant 0.000000e+00 : f32
    %82 = vector.broadcast %cst_99 : f32 to vector<8x128xf32>
    %83 = arith.maximumf %81, %82 : vector<8x128xf32>
    %c0_100 = arith.constant 0 : index
    %c0_101 = arith.constant 0 : index
    %c0_102 = arith.constant 0 : index
    %84 = vector.load %arg9[%c0_100, %c0_101, %c0_102] : memref<1x8x128xf32, #tpu.memory_space<vmem>>, vector<1x8x128xf32>
    %85 = vector.shape_cast %84 : vector<1x8x128xf32> to vector<8x128xf32>
    %86 = vector.shape_cast %83 : vector<8x128xf32> to vector<1x8x128xf32>
    tpu.vector_store %arg9[%c0_100, %c0_101, %c0_102], %86 {strides = array<i32>} : memref<1x8x128xf32, #tpu.memory_space<vmem>>, vector<1x8x128xf32>,
    return
  }
  func.func @transform_0(%arg0: i32, %arg1: i32) -> (i32, i32, i32) {
    %c0_i32 = arith.constant 0 : i32
    %c0_i32_0 = arith.constant 0 : i32
    return %arg0, %arg1, %c0_i32 : i32, i32, i32
  }
  func.func @transform_1(%arg0: i32, %arg1: i32) -> (i32, i32, i32) {
    %c0_i32 = arith.constant 0 : i32
    %c0_i32_0 = arith.constant 0 : i32
    %c0_i32_1 = arith.constant 0 : i32
    %c0_i32_2 = arith.constant 0 : i32
    return %c0_i32, %c0_i32_0, %c0_i32_1 : i32, i32, i32
  }
  func.func @transform_2(%arg0: i32, %arg1: i32) -> (i32, i32) {
    %c0_i32 = arith.constant 0 : i32
    %c0_i32_0 = arith.constant 0 : i32
    %c0_i32_1 = arith.constant 0 : i32
    return %c0_i32, %c0_i32_0 : i32, i32
  }
  func.func @transform_3(%arg0: i32, %arg1: i32) -> (i32, i32, i32) {
    %c0_i32 = arith.constant 0 : i32
    %c0_i32_0 = arith.constant 0 : i32
    %c0_i32_1 = arith.constant 0 : i32
    %c0_i32_2 = arith.constant 0 : i32
    return %c0_i32, %c0_i32_0, %c0_i32_1 : i32, i32, i32
  }
  func.func @transform_4(%arg0: i32, %arg1: i32) -> (i32, i32) {
    %c0_i32 = arith.constant 0 : i32
    %c0_i32_0 = arith.constant 0 : i32
    %c0_i32_1 = arith.constant 0 : i32
    return %c0_i32, %c0_i32_0 : i32, i32
  }
  func.func @transform_5(%arg0: i32, %arg1: i32) -> (i32, i32) {
    %c0_i32 = arith.constant 0 : i32
    %c0_i32_0 = arith.constant 0 : i32
    %c0_i32_1 = arith.constant 0 : i32
    return %c0_i32, %c0_i32_0 : i32, i32
  }
  func.func @transform_6(%arg0: i32, %arg1: i32) -> (i32, i32) {
    %c0_i32 = arith.constant 0 : i32
    %c0_i32_0 = arith.constant 0 : i32
    %c0_i32_1 = arith.constant 0 : i32
    return %c0_i32, %c0_i32_0 : i32, i32
  }
  func.func @transform_7(%arg0: i32, %arg1: i32) -> (i32, i32, i32) {
    %c0_i32 = arith.constant 0 : i32
    %c0_i32_0 = arith.constant 0 : i32
    return %arg0, %arg1, %c0_i32 : i32, i32, i32
  }
}

</mosaic_0001>

<llo_original>
// kernel: tpu_custom_call.1
$region0: #{tpu_custom_call.1}
  #allocation0 [shape = 'u32[]', space=smem, size = 0x4, offset = 0x4, fixed_abs, tag = 'smem constant byte address 0x4 - core index']
  #allocation1 [shape = 'u32[72,128]{1,0:T(1,128)}', space=vmem, size = 0x9000, scoped, tag = 'internal scratch']
  #allocation2 [shape = 'f32[16,128]{1,0:T(8,128)}', space=vmem, size = 0x2000, scoped, tag = 'scratch operand']
  #allocation3 [shape = 'f32[16,128]{1,0:T(8,128)}', space=vmem, size = 0x2000, scoped, tag = 'scratch operand']
  #allocation4 [shape = 'f32[8,128]{1,0:T(8,128)}', space=vmem, size = 0x1000, scoped, tag = 'scratch operand']
  %s0 = inlined_call_operand.hbm [shape: f32[2,24,128], index: 0, kind: input, shape index: {}]
  %s1 = inlined_call_operand.hbm [shape: f32[3,128,128], index: 1, kind: input, shape index: {}]
  %s2 = inlined_call_operand.vmem [shape: f32[1,128], index: 2, kind: input, shape index: {}]
  %s3 = inlined_call_operand.hbm [shape: f32[3,128,128], index: 3, kind: input, shape index: {}]
  %s4 = inlined_call_operand.vmem [shape: f32[1,128], index: 4, kind: input, shape index: {}]
  %s5 = inlined_call_operand.hbm [shape: f32[128,128], index: 5, kind: input, shape index: {}]
  %s6 = inlined_call_operand.vmem [shape: f32[1,128], index: 6, kind: input, shape index: {}]
  %s7 = inlined_call_operand.hbm [shape: f32[2,24,128], index: 7, kind: output, shape index: {}]
  %s8 = sld [smem:[#allocation0]]
  $region85: #{tpu_custom_call.1} parent=0
    _
  %s10 = ssub.s32 1, %s8
  %s11 = scalar_select 0, %s10, %s8
  $region1: #{tpu_custom_call.1} parent=0
    #allocation5 [shape = 'u8[8192]{0}', space=vmem, size = 0x2000, scoped, tag = 'input window, operand 0']
    #allocation6 [shape = 's32[2]{0}', space=sflag, size = 0x8, scoped, tag = 'scoped memory for tpu_custom_call.1']
    #allocation7 [shape = 's32[2]{0}', space=sflag, size = 0x8, scoped, tag = 'scoped memory for tpu_custom_call.1']
    #allocation8 [shape = 'u8[196608]{0}', space=vmem, size = 0x30000, scoped, tag = 'input window, operand 1, single buffered']
    #allocation9 [shape = 's32[1]{0}', space=sflag, size = 0x4, scoped, tag = 'scoped memory for tpu_custom_call.1']
    #allocation10 [shape = 'u8[196608]{0}', space=vmem, size = 0x30000, scoped, tag = 'input window, operand 3, single buffered']
    #allocation11 [shape = 'u8[65536]{0}', space=vmem, size = 0x10000, scoped, tag = 'input window, operand 5, single buffered']
    #allocation12 [shape = 's32[1]{0}', space=sflag, size = 0x4, scoped, tag = 'scoped memory for tpu_custom_call.1']
    #allocation13 [shape = 'u8[8192]{0}', space=vmem, size = 0x2000, scoped, tag = 'output window, operand 0']
    %12 = vsyncpa [#allocation6], 0
    %s13 = scalar_lea.sflag [#allocation6], 1
    %14 = vsyncpa %s13, 0
    %15 = vsyncpa [#allocation9], 0
    %16 = vsyncpa [#allocation12], 0
    %17 = vsyncpa [#allocation7], 0
    %s18 = scalar_lea.sflag [#allocation7], 1
    %19 = vsyncpa %s18, 0
    loop: start=0, step=1, limit=8
    $region2: #{tpu_custom_call.1} parent=1 // loop_pre_header
      _
    $region3: #{tpu_custom_call.1} parent=1 // loop_header
      %s21 = sphi 0, %s25
      %p22 = scmp.ge.s32.totalorder %s21, 8
      %s28 = sphi 0, %s40
      %s29 = sphi 0, %s36
      %s30 = sphi 0, %s28
      %s31 = sphi 0, %s29
      %s32 = sphi 0, %s30
      %s33 = sphi 0, %s31
      %s45 = sphi 0, %s47
      %s48 = sphi 0, %s45
      %s49 = sphi 0, %s48
      %s65 = sphi 0, %s49
      %s69 = sphi 0, %s69
      %s71 = sphi 0, %s69
      %s72 = sphi 0, %s71
      %s86 = sphi 0, %s72
      %s90 = sphi 0, %s90
      %s92 = sphi 0, %s90
      %s93 = sphi 0, %s92
      %s107 = sphi 0, %s93
      %s111 = sphi 0, %s111
      %s113 = sphi 0, %s111
      %s114 = sphi 0, %s113
      %s128 = sphi 0, %s114
      %s132 = sphi 0, %s132
      %s134 = sphi 0, %s132
      %s135 = sphi 0, %s134
      %s149 = sphi 0, %s135
      %s153 = sphi 0, %s153
      %s155 = sphi 0, %s153
      %s156 = sphi 0, %s155
      %s170 = sphi 0, %s156
      %s174 = sphi 0, %s174
      %s176 = sphi 0, %s174
      %s177 = sphi 0, %s176
      %s191 = sphi 0, %s177
      %s199 = sphi 0, %s201
      %s202 = sphi 0, %s199
      %s203 = sphi 0, %s202
      %s219 = sphi 0, %s203
    $region4: #{tpu_custom_call.1} parent=1 // loop_header_branch
      %24 = sbr.rel (%p22) target = $region8
    $region5: #{tpu_custom_call.1} parent=1 // loop_body
      %s26 = ssub.s32 %s21, 1
      %s27 = ssub.s32 %s21, 2
      %s34 = sadd.s32 1, %s29
      %p35 = scmp.ge.s32.totalorder %s34, 3
      %s36 = scalar_select %p35, 0, %s34
      %s37 = sadd.s32 1, %s28
      %s38 = scalar_select %p35, %s37, %s28
      %p39 = scmp.ge.s32.totalorder %s38, 2
      %s40 = scalar_select %p39, 0, %s38
      %s41 = ssub.s32 %s28, %s40
      %s42 = ssub.s32 %s29, %s36
      %s43 = sor.u32 %s41, %s42
      %p44 = scmp.eq.s32.totalorder %s43, 0
      %s46 = sadd.s32 %s45, 1
      %s47 = scalar_select %p44, %s45, %s46
      %p50 = pneg %p44
      %p51 = scmp.eq.s32.totalorder %s21, 5
      %p52 = por %p50, %p51
      %p53 = scmp.ne.s32.totalorder %s45, %s48
      %p54 = scmp.eq.s32.totalorder %s21, 0
      %p55 = por %p53, %p54
      %p56 = scmp.ne.s32.totalorder %s45, %s48
      %p57 = scmp.eq.s32.totalorder %s26, 5
      %p58 = por %p56, %p57
      %p59 = scmp.ne.s32.totalorder %s48, %s49
      %p60 = scmp.eq.s32.totalorder %s26, 0
      %p61 = por %p59, %p60
      %p62 = scmp.ne.s32.totalorder %s48, %s49
      %p63 = scmp.eq.s32.totalorder %s27, 5
      %p64 = por %p62, %p63
      %p66 = scmp.ne.s32.totalorder %s49, %s65
      %p67 = scmp.eq.s32.totalorder %s27, 0
      %p68 = por %p66, %p67
      %s70 = sadd.s32 %s69, 1
      %p73 = scmp.eq.s32.totalorder %s21, 5
      %p74 = scmp.ne.s32.totalorder %s69, %s71
      %p75 = scmp.eq.s32.totalorder %s21, 0
      %p76 = por %p74, %p75
      %p77 = scmp.ne.s32.totalorder %s69, %s71
      %p78 = scmp.eq.s32.totalorder %s26, 5
      %p79 = por %p77, %p78
      %p80 = scmp.ne.s32.totalorder %s71, %s72
      %p81 = scmp.eq.s32.totalorder %s26, 0
      %p82 = por %p80, %p81
      %p83 = scmp.ne.s32.totalorder %s71, %s72
      %p84 = scmp.eq.s32.totalorder %s27, 5
      %p85 = por %p83, %p84
      %p87 = scmp.ne.s32.totalorder %s72, %s86
      %p88 = scmp.eq.s32.totalorder %s27, 0
      %p89 = por %p87, %p88
      %s91 = sadd.s32 %s90, 1
      %p94 = scmp.eq.s32.totalorder %s21, 5
      %p95 = scmp.ne.s32.totalorder %s90, %s92
      %p96 = scmp.eq.s32.totalorder %s21, 0
      %p97 = por %p95, %p96
      %p98 = scmp.ne.s32.totalorder %s90, %s92
      %p99 = scmp.eq.s32.totalorder %s26, 5
      %p100 = por %p98, %p99
      %p101 = scmp.ne.s32.totalorder %s92, %s93
      %p102 = scmp.eq.s32.totalorder %s26, 0
      %p103 = por %p101, %p102
      %p104 = scmp.ne.s32.totalorder %s92, %s93
      %p105 = scmp.eq.s32.totalorder %s27, 5
      %p106 = por %p104, %p105
      %p108 = scmp.ne.s32.totalorder %s93, %s107
      %p109 = scmp.eq.s32.totalorder %s27, 0
      %p110 = por %p108, %p109
      %s112 = sadd.s32 %s111, 1
      %p115 = scmp.eq.s32.totalorder %s21, 5
      %p116 = scmp.ne.s32.totalorder %s111, %s113
      %p117 = scmp.eq.s32.totalorder %s21, 0
      %p118 = por %p116, %p117
      %p119 = scmp.ne.s32.totalorder %s111, %s113
      %p120 = scmp.eq.s32.totalorder %s26, 5
      %p121 = por %p119, %p120
      %p122 = scmp.ne.s32.totalorder %s113, %s114
      %p123 = scmp.eq.s32.totalorder %s26, 0
      %p124 = por %p122, %p123
      %p125 = scmp.ne.s32.totalorder %s113, %s114
      %p126 = scmp.eq.s32.totalorder %s27, 5
      %p127 = por %p125, %p126
      %p129 = scmp.ne.s32.totalorder %s114, %s128
      %p130 = scmp.eq.s32.totalorder %s27, 0
      %p131 = por %p129, %p130
      %s133 = sadd.s32 %s132, 1
      %p136 = scmp.eq.s32.totalorder %s21, 5
      %p137 = scmp.ne.s32.totalorder %s132, %s134
      %p138 = scmp.eq.s32.totalorder %s21, 0
      %p139 = por %p137, %p138
      %p140 = scmp.ne.s32.totalorder %s132, %s134
      %p141 = scmp.eq.s32.totalorder %s26, 5
      %p142 = por %p140, %p141
      %p143 = scmp.ne.s32.totalorder %s134, %s135
      %p144 = scmp.eq.s32.totalorder %s26, 0
      %p145 = por %p143, %p144
      %p146 = scmp.ne.s32.totalorder %s134, %s135
      %p147 = scmp.eq.s32.totalorder %s27, 5
      %p148 = por %p146, %p147
      %p150 = scmp.ne.s32.totalorder %s135, %s149
      %p151 = scmp.eq.s32.totalorder %s27, 0
      %p152 = por %p150, %p151
      %s154 = sadd.s32 %s153, 1
      %p157 = scmp.eq.s32.totalorder %s21, 5
      %p158 = scmp.ne.s32.totalorder %s153, %s155
      %p159 = scmp.eq.s32.totalorder %s21, 0
      %p160 = por %p158, %p159
      %p161 = scmp.ne.s32.totalorder %s153, %s155
      %p162 = scmp.eq.s32.totalorder %s26, 5
      %p163 = por %p161, %p162
      %p164 = scmp.ne.s32.totalorder %s155, %s156
      %p165 = scmp.eq.s32.totalorder %s26, 0
      %p166 = por %p164, %p165
      %p167 = scmp.ne.s32.totalorder %s155, %s156
      %p168 = scmp.eq.s32.totalorder %s27, 5
      %p169 = por %p167, %p168
      %p171 = scmp.ne.s32.totalorder %s156, %s170
      %p172 = scmp.eq.s32.totalorder %s27, 0
      %p173 = por %p171, %p172
      %s175 = sadd.s32 %s174, 1
      %p178 = scmp.eq.s32.totalorder %s21, 5
      %p179 = scmp.ne.s32.totalorder %s174, %s176
      %p180 = scmp.eq.s32.totalorder %s21, 0
      %p181 = por %p179, %p180
      %p182 = scmp.ne.s32.totalorder %s174, %s176
      %p183 = scmp.eq.s32.totalorder %s26, 5
      %p184 = por %p182, %p183
      %p185 = scmp.ne.s32.totalorder %s176, %s177
      %p186 = scmp.eq.s32.totalorder %s26, 0
      %p187 = por %p185, %p186
      %p188 = scmp.ne.s32.totalorder %s176, %s177
      %p189 = scmp.eq.s32.totalorder %s27, 5
      %p190 = por %p188, %p189
      %p192 = scmp.ne.s32.totalorder %s177, %s191
      %p193 = scmp.eq.s32.totalorder %s27, 0
      %p194 = por %p192, %p193
      %s195 = ssub.s32 %s28, %s40
      %s196 = ssub.s32 %s29, %s36
      %s197 = sor.u32 %s195, %s196
      %p198 = scmp.eq.s32.totalorder %s197, 0
      %s200 = sadd.s32 %s199, 1
      %s201 = scalar_select %p198, %s199, %s200
      %p204 = pneg %p198
      %p205 = scmp.eq.s32.totalorder %s21, 5
      %p206 = por %p204, %p205
      %p207 = scmp.ne.s32.totalorder %s199, %s202
      %p208 = scmp.eq.s32.totalorder %s21, 0
      %p209 = por %p207, %p208
      %p210 = scmp.ne.s32.totalorder %s199, %s202
      %p211 = scmp.eq.s32.totalorder %s26, 5
      %p212 = por %p210, %p211
      %p213 = scmp.ne.s32.totalorder %s202, %s203
      %p214 = scmp.eq.s32.totalorder %s26, 0
      %p215 = por %p213, %p214
      %p216 = scmp.ne.s32.totalorder %s202, %s203
      %p217 = scmp.eq.s32.totalorder %s27, 5
      %p218 = por %p216, %p217
      %p220 = scmp.ne.s32.totalorder %s203, %s219
      %p221 = scmp.eq.s32.totalorder %s27, 0
      %p222 = por %p220, %p221
      %p223 = scmp.le.s32.totalorder 1, %s21
      %p224 = scmp.lt.s32.totalorder %s21, 7
      %p225 = pnand %p223, %p224
      %p226 = pneg %p225
      // Predicated region
      $region9: #{tpu_custom_call.1} parent=5 // pred_check
        _
      $region10: #{tpu_custom_call.1} parent=5 // pred_check_branch
        %228 = sbr.rel (%p225) target = $region12
      $region11: #{tpu_custom_call.1} parent=5 // pred_region
        %s229 = ssub.s32 %s21, 1
        // Predicated region
        $region13: #{tpu_custom_call.1} parent=11 // pred_check
          %p230 = pneg %p82
        $region14: #{tpu_custom_call.1} parent=11 // pred_check_branch
          %232 = sbr.rel (%p230) target = $region16
        $region15: #{tpu_custom_call.1} parent=11 // pred_region
          %234 = vsyncadd [#allocation9], 0
          %s235 = sshll.u32 %s1, 4
          %s236 = int_to_ptr.hbm [resolvable:$true] %s235
          %s237 = sshll.u32 [#allocation8], 4
          %s238 = int_to_ptr.vmem [resolvable:$true] %s237
          %243 = dma.hbm_to_vmem [thread:$0]  %s236, 6144, %s238, [#allocation9], 128, 128, 8
        $region16: #{tpu_custom_call.1} parent=11 // pred_fallthru
          _
        // Predicated region
        $region17: #{tpu_custom_call.1} parent=11 // pred_check
          %p244 = pneg %p103
        $region18: #{tpu_custom_call.1} parent=11 // pred_check_branch
          %246 = sbr.rel (%p244) target = $region20
        $region19: #{tpu_custom_call.1} parent=11 // pred_region
          _
        $region20: #{tpu_custom_call.1} parent=11 // pred_fallthru
          _
        // Predicated region
        $region21: #{tpu_custom_call.1} parent=11 // pred_check
          %p247 = pneg %p124
        $region22: #{tpu_custom_call.1} parent=11 // pred_check_branch
          %249 = sbr.rel (%p247) target = $region24
        $region23: #{tpu_custom_call.1} parent=11 // pred_region
          %251 = vsyncadd [#allocation9], 0
          %s252 = sshll.u32 %s3, 4
          %s253 = int_to_ptr.hbm [resolvable:$true] %s252
          %s254 = sshll.u32 [#allocation10], 4
          %s255 = int_to_ptr.vmem [resolvable:$true] %s254
          %260 = dma.hbm_to_vmem [thread:$0]  %s253, 6144, %s255, [#allocation9], 128, 128, 8
        $region24: #{tpu_custom_call.1} parent=11 // pred_fallthru
          _
        // Predicated region
        $region25: #{tpu_custom_call.1} parent=11 // pred_check
          %p261 = pneg %p145
        $region26: #{tpu_custom_call.1} parent=11 // pred_check_branch
          %263 = sbr.rel (%p261) target = $region28
        $region27: #{tpu_custom_call.1} parent=11 // pred_region
          _
        $region28: #{tpu_custom_call.1} parent=11 // pred_fallthru
          _
        // Predicated region
        $region29: #{tpu_custom_call.1} parent=11 // pred_check
          %p264 = pneg %p166
        $region30: #{tpu_custom_call.1} parent=11 // pred_check_branch
          %266 = sbr.rel (%p264) target = $region32
        $region31: #{tpu_custom_call.1} parent=11 // pred_region
          %268 = vsyncadd [#allocation12], 0
          %s269 = sshll.u32 %s5, 4
          %s270 = int_to_ptr.hbm [resolvable:$true] %s269
          %s271 = sshll.u32 [#allocation11], 4
          %s272 = int_to_ptr.vmem [resolvable:$true] %s271
          %277 = dma.hbm_to_vmem [thread:$0]  %s270, 2048, %s272, [#allocation12], 128, 128, 8
        $region32: #{tpu_custom_call.1} parent=11 // pred_fallthru
          _
        // Predicated region
        $region33: #{tpu_custom_call.1} parent=11 // pred_check
          %p278 = pneg %p187
        $region34: #{tpu_custom_call.1} parent=11 // pred_check_branch
          %280 = sbr.rel (%p278) target = $region36
        $region35: #{tpu_custom_call.1} parent=11 // pred_region
          _
        $region36: #{tpu_custom_call.1} parent=11 // pred_fallthru
          _
      $region12: #{tpu_custom_call.1} parent=5 // pred_fallthru
        _
      %p281 = scmp.lt.s32.totalorder %s21, 6
      // Predicated region
      $region37: #{tpu_custom_call.1} parent=5 // pred_check
        %p282 = pneg %p281
      $region38: #{tpu_custom_call.1} parent=5 // pred_check_branch
        %284 = sbr.rel (%p282) target = $region40
      $region39: #{tpu_custom_call.1} parent=5 // pred_region
        // Predicated region
        $region41: #{tpu_custom_call.1} parent=39 // pred_check
          %p285 = pneg %p55
        $region42: #{tpu_custom_call.1} parent=39 // pred_check_branch
          %287 = sbr.rel (%p285) target = $region44
        $region43: #{tpu_custom_call.1} parent=39 // pred_region
          %s288 = sand.u32 %s45, 1
          %s289 = scalar_lea.sflag [#allocation6], %s288
          %s290 = sand.u32 %s45, 1
          %s291 = smul.addr %s290, 8
          %s292 = scalar_lea.vmem [#allocation5], %s291
          %294 = vsyncadd %s289, 0
          %s295 = smul.addr %s28, 3
          %s296 = sadd.s32 %s29, %s295
          %s297 = smul.addr %s296, 8
          %s298 = scalar_lea.hbm %s0, %s297
          %s300 = sshll.u32 %s298, 4
          %s301 = int_to_ptr.hbm [resolvable:$true] %s300
          %s302 = sshll.u32 %s292, 4
          %s303 = int_to_ptr.vmem [resolvable:$true] %s302
          %305 = dma.hbm_to_vmem [thread:$0]  %s301, 128, %s303, %s289
        $region44: #{tpu_custom_call.1} parent=39 // pred_fallthru
          _
      $region40: #{tpu_custom_call.1} parent=5 // pred_fallthru
        _
      %p306 = scmp.le.s32.totalorder 1, %s21
      %p307 = scmp.lt.s32.totalorder %s21, 7
      %p308 = pnand %p306, %p307
      %p309 = pneg %p308
      // Predicated region
      $region45: #{tpu_custom_call.1} parent=5 // pred_check
        _
      $region46: #{tpu_custom_call.1} parent=5 // pred_check_branch
        %311 = sbr.rel (%p308) target = $region48
      $region47: #{tpu_custom_call.1} parent=5 // pred_region
        %s312 = ssub.s32 %s21, 1
        %s313 = sand.u32 %s48, 1
        %s314 = scalar_lea.sflag [#allocation6], %s313
        %s315 = sand.u32 %s48, 1
        %s316 = smul.addr %s315, 8
        %s317 = scalar_lea.vmem [#allocation5], %s316
        // Predicated region
        $region49: #{tpu_custom_call.1} parent=47 // pred_check
          %p318 = pneg %p61
        $region50: #{tpu_custom_call.1} parent=47 // pred_check_branch
          %320 = sbr.rel (%p318) target = $region52
        $region51: #{tpu_custom_call.1} parent=47 // pred_region
          %322 = dma.done %s314, 128
        $region52: #{tpu_custom_call.1} parent=47 // pred_fallthru
          _
        // Predicated region
        $region53: #{tpu_custom_call.1} parent=47 // pred_check
          %p323 = pneg %p82
        $region54: #{tpu_custom_call.1} parent=47 // pred_check_branch
          %325 = sbr.rel (%p323) target = $region56
        $region55: #{tpu_custom_call.1} parent=47 // pred_region
          %327 = dma.done [#allocation9], 6144
        $region56: #{tpu_custom_call.1} parent=47 // pred_fallthru
          _
        // Predicated region
        $region57: #{tpu_custom_call.1} parent=47 // pred_check
          %p328 = pneg %p124
        $region58: #{tpu_custom_call.1} parent=47 // pred_check_branch
          %330 = sbr.rel (%p328) target = $region60
        $region59: #{tpu_custom_call.1} parent=47 // pred_region
          %332 = dma.done [#allocation9], 6144
        $region60: #{tpu_custom_call.1} parent=47 // pred_fallthru
          _
        // Predicated region
        $region61: #{tpu_custom_call.1} parent=47 // pred_check
          %p333 = pneg %p166
        $region62: #{tpu_custom_call.1} parent=47 // pred_check_branch
          %335 = sbr.rel (%p333) target = $region64
        $region63: #{tpu_custom_call.1} parent=47 // pred_region
          %337 = dma.done [#allocation12], 2048
        $region64: #{tpu_custom_call.1} parent=47 // pred_fallthru
          _
        %s338 = sand.u32 %s48, 1
        %s339 = scalar_lea.sflag [#allocation6], %s338
        %s340 = sand.u32 %s48, 1
        %s341 = smul.addr %s340, 8
        %s342 = scalar_lea.vmem [#allocation5], %s341
        %p343 = pneg %p61
        %p344 = pneg %p58
        %p345 = pneg %p82
        %p346 = pneg %p79
        %p347 = pneg %p103
        %p348 = pneg %p100
        %p349 = pneg %p124
        %p350 = pneg %p121
        %p351 = pneg %p145
        %p352 = pneg %p142
        %p353 = pneg %p166
        %p354 = pneg %p163
        %p355 = pneg %p187
        %p356 = pneg %p184
        %p357 = pneg %p215
        %p358 = pneg %p212
        %s359 = sand.u32 %s202, 1
        %s360 = scalar_lea.sflag [#allocation7], %s359
        %s361 = sand.u32 %s202, 1
        %s362 = smul.addr %s361, 8
        %s363 = scalar_lea.vmem [#allocation13], %s362
        %p364 = scmp.eq.s32.totalorder %s31, 0
        // Predicated region
        $region65: #{tpu_custom_call.1} parent=47 // pred_check
          %p365 = pneg %p364
        $region66: #{tpu_custom_call.1} parent=47 // pred_check_branch
          %367 = sbr.rel (%p365) target = $region68
        $region67: #{tpu_custom_call.1} parent=47 // pred_region
          %368 = vst [vmem:[#allocation2] sm:$0xff] 0.0
          %369 = vst [vmem:[#allocation3] sm:$0xff] 0.0
        $region68: #{tpu_custom_call.1} parent=47 // pred_fallthru
          _
        %p370 = scmp.gt.s32.totalorder %s31, 0
        // Predicated region
        $region69: #{tpu_custom_call.1} parent=47 // pred_check
          %p371 = pneg %p370
        $region70: #{tpu_custom_call.1} parent=47 // pred_check_branch
          %373 = sbr.rel (%p371) target = $region72
        $region71: #{tpu_custom_call.1} parent=47 // pred_region
          %v374 = vld [vmem:[#allocation2 + $0xe] sm:$0x3]
          %375 = vst [vmem:[#allocation2 + $0x6] sm:$0x3] %v374
          %v376 = vld [vmem:[#allocation3 + $0xe] sm:$0x3]
          %377 = vst [vmem:[#allocation3 + $0x6] sm:$0x3] %v376
        $region72: #{tpu_custom_call.1} parent=47 // pred_fallthru
          _
        %v378 = vld [vmem:[%s317] sm:$0xff]
        %379 = vst [vmem:[#allocation2 + $0x8] sm:$0xff] %v378
        %380 = vst [vmem:[#allocation4] sm:$0xff] 0.0
        %v381 = vld [vmem:[#allocation4] sm:$0xff]
        %v382 = vld [vmem:[#allocation2 + $0x6] sm:$0xff]
        %v383 = vld [vmem:[#allocation8] sm:$0xff]
        %v384 = vld [vmem:[#allocation8 + $0x8] sm:$0xff]
        %v385 = vld [vmem:[#allocation8 + $0x10] sm:$0xff]
        %v386 = vld [vmem:[#allocation8 + $0x18] sm:$0xff]
        %v387 = vld [vmem:[#allocation8 + $0x20] sm:$0xff]
        %v388 = vld [vmem:[#allocation8 + $0x28] sm:$0xff]
        %v389 = vld [vmem:[#allocation8 + $0x30] sm:$0xff]
        %v390 = vld [vmem:[#allocation8 + $0x38] sm:$0xff]
        %v391 = vld [vmem:[#allocation8 + $0x40] sm:$0xff]
        %v392 = vld [vmem:[#allocation8 + $0x48] sm:$0xff]
        %v393 = vld [vmem:[#allocation8 + $0x50] sm:$0xff]
        %v394 = vld [vmem:[#allocation8 + $0x58] sm:$0xff]
        %v395 = vld [vmem:[#allocation8 + $0x60] sm:$0xff]
        %v396 = vld [vmem:[#allocation8 + $0x68] sm:$0xff]
        %v397 = vld [vmem:[#allocation8 + $0x70] sm:$0xff]
        %v398 = vld [vmem:[#allocation8 + $0x78] sm:$0xff]
        %399 = vmatpush.msra.mxu0 %v398
        %400 = vmatpush.msra.mxu0 %v397
        %401 = vmatpush.msra.mxu0 %v396
        %402 = vmatpush.msra.mxu0 %v395
        %403 = vmatpush.msra.mxu0 %v394
        %404 = vmatpush.msra.mxu0 %v393
        %405 = vmatpush.msra.mxu0 %v392
        %406 = vmatpush.msra.mxu0 %v391
        %407 = vmatpush.msra.mxu0 %v390
        %408 = vmatpush.msra.mxu0 %v389
        %409 = vmatpush.msra.mxu0 %v388
        %410 = vmatpush.msra.mxu0 %v387
        %411 = vmatpush.msra.mxu0 %v386
        %412 = vmatpush.msra.mxu0 %v385
        %413 = vmatpush.msra.mxu0 %v384
        %414 = vmatpush.msra.mxu0 %v383
        %415 = vmatmul.f32.gmra.mxu0 %v382
        %v416 = vpop.f32.mrf.mxu0
        %v417 = vadd.f32 0.0, %v416
        %418 = vdwg.mxu0
        %v419 = vadd.f32 %v381, %v417
        %420 = vst [vmem:[#allocation4] sm:$0xff] %v419
        %v421 = vld [vmem:[#allocation4] sm:$0xff]
        %v422 = vld [vmem:[#allocation2 + $0x7] sm:$0xff]
        %s423 = scalar_lea.vmem [#allocation8], 128
        %v424 = vld [vmem:[%s423] sm:$0xff]
        %v425 = vld [vmem:[%s423 + $0x8] sm:$0xff]
        %v426 = vld [vmem:[%s423 + $0x10] sm:$0xff]
        %v427 = vld [vmem:[%s423 + $0x18] sm:$0xff]
        %v428 = vld [vmem:[%s423 + $0x20] sm:$0xff]
        %v429 = vld [vmem:[%s423 + $0x28] sm:$0xff]
        %v430 = vld [vmem:[%s423 + $0x30] sm:$0xff]
        %v431 = vld [vmem:[%s423 + $0x38] sm:$0xff]
        %v432 = vld [vmem:[%s423 + $0x40] sm:$0xff]
        %v433 = vld [vmem:[%s423 + $0x48] sm:$0xff]
        %v434 = vld [vmem:[%s423 + $0x50] sm:$0xff]
        %v435 = vld [vmem:[%s423 + $0x58] sm:$0xff]
        %v436 = vld [vmem:[%s423 + $0x60] sm:$0xff]
        %v437 = vld [vmem:[%s423 + $0x68] sm:$0xff]
        %v438 = vld [vmem:[%s423 + $0x70] sm:$0xff]
        %v439 = vld [vmem:[%s423 + $0x78] sm:$0xff]
        %440 = vmatpush.msra.mxu0 %v439
        %441 = vmatpush.msra.mxu0 %v438
        %442 = vmatpush.msra.mxu0 %v437
        %443 = vmatpush.msra.mxu0 %v436
        %444 = vmatpush.msra.mxu0 %v435
        %445 = vmatpush.msra.mxu0 %v434
        %446 = vmatpush.msra.mxu0 %v433
        %447 = vmatpush.msra.mxu0 %v432
        %448 = vmatpush.msra.mxu0 %v431
        %449 = vmatpush.msra.mxu0 %v430
        %450 = vmatpush.msra.mxu0 %v429
        %451 = vmatpush.msra.mxu0 %v428
        %452 = vmatpush.msra.mxu0 %v427
        %453 = vmatpush.msra.mxu0 %v426
        %454 = vmatpush.msra.mxu0 %v425
        %455 = vmatpush.msra.mxu0 %v424
        %456 = vmatmul.f32.gmra.mxu0 %v422
        %v457 = vpop.f32.mrf.mxu0
        %v458 = vadd.f32 0.0, %v457
        %459 = vdwg.mxu0
        %v460 = vadd.f32 %v421, %v458
        %461 = vst [vmem:[#allocation4] sm:$0xff] %v460
        %v462 = vld [vmem:[#allocation4] sm:$0xff]
        %v463 = vld [vmem:[#allocation2 + $0x8] sm:$0xff]
        %s464 = scalar_lea.vmem [#allocation8], 256
        %v465 = vld [vmem:[%s464] sm:$0xff]
        %v466 = vld [vmem:[%s464 + $0x8] sm:$0xff]
        %v467 = vld [vmem:[%s464 + $0x10] sm:$0xff]
        %v468 = vld [vmem:[%s464 + $0x18] sm:$0xff]
        %v469 = vld [vmem:[%s464 + $0x20] sm:$0xff]
        %v470 = vld [vmem:[%s464 + $0x28] sm:$0xff]
        %v471 = vld [vmem:[%s464 + $0x30] sm:$0xff]
        %v472 = vld [vmem:[%s464 + $0x38] sm:$0xff]
        %v473 = vld [vmem:[%s464 + $0x40] sm:$0xff]
        %v474 = vld [vmem:[%s464 + $0x48] sm:$0xff]
        %v475 = vld [vmem:[%s464 + $0x50] sm:$0xff]
        %v476 = vld [vmem:[%s464 + $0x58] sm:$0xff]
        %v477 = vld [vmem:[%s464 + $0x60] sm:$0xff]
        %v478 = vld [vmem:[%s464 + $0x68] sm:$0xff]
        %v479 = vld [vmem:[%s464 + $0x70] sm:$0xff]
        %v480 = vld [vmem:[%s464 + $0x78] sm:$0xff]
        %481 = vmatpush.msra.mxu0 %v480
        %482 = vmatpush.msra.mxu0 %v479
        %483 = vmatpush.msra.mxu0 %v478
        %484 = vmatpush.msra.mxu0 %v477
        %485 = vmatpush.msra.mxu0 %v476
        %486 = vmatpush.msra.mxu0 %v475
        %487 = vmatpush.msra.mxu0 %v474
        %488 = vmatpush.msra.mxu0 %v473
        %489 = vmatpush.msra.mxu0 %v472
        %490 = vmatpush.msra.mxu0 %v471
        %491 = vmatpush.msra.mxu0 %v470
        %492 = vmatpush.msra.mxu0 %v469
        %493 = vmatpush.msra.mxu0 %v468
        %494 = vmatpush.msra.mxu0 %v467
        %495 = vmatpush.msra.mxu0 %v466
        %496 = vmatpush.msra.mxu0 %v465
        %497 = vmatmul.f32.gmra.mxu0 %v463
        %v498 = vpop.f32.mrf.mxu0
        %v499 = vadd.f32 0.0, %v498
        %500 = vdwg.mxu0
        %v501 = vadd.f32 %v462, %v499
        %502 = vst [vmem:[#allocation4] sm:$0xff] %v501
        %v503 = vld [vmem:[#allocation4] sm:$0xff]
        %v504 = vld [vmem:[%s2] sm:$0x1]
        %v506 = vperm.slane %v504, 0
        %v508 = vadd.f32 %v503, %v506
        %v509 = vmax.f32 %v508, 0.0
        %510 = vst [vmem:[#allocation3 + $0x8] sm:$0xff] %v509
        %511 = vst [vmem:[#allocation4] sm:$0xff] 0.0
        %v512 = vld [vmem:[#allocation4] sm:$0xff]
        %v513 = vld [vmem:[#allocation3 + $0x6] sm:$0xff]
        %v514 = vld [vmem:[#allocation10] sm:$0xff]
        %v515 = vld [vmem:[#allocation10 + $0x8] sm:$0xff]
        %v516 = vld [vmem:[#allocation10 + $0x10] sm:$0xff]
        %v517 = vld [vmem:[#allocation10 + $0x18] sm:$0xff]
        %v518 = vld [vmem:[#allocation10 + $0x20] sm:$0xff]
        %v519 = vld [vmem:[#allocation10 + $0x28] sm:$0xff]
        %v520 = vld [vmem:[#allocation10 + $0x30] sm:$0xff]
        %v521 = vld [vmem:[#allocation10 + $0x38] sm:$0xff]
        %v522 = vld [vmem:[#allocation10 + $0x40] sm:$0xff]
        %v523 = vld [vmem:[#allocation10 + $0x48] sm:$0xff]
        %v524 = vld [vmem:[#allocation10 + $0x50] sm:$0xff]
        %v525 = vld [vmem:[#allocation10 + $0x58] sm:$0xff]
        %v526 = vld [vmem:[#allocation10 + $0x60] sm:$0xff]
        %v527 = vld [vmem:[#allocation10 + $0x68] sm:$0xff]
        %v528 = vld [vmem:[#allocation10 + $0x70] sm:$0xff]
        %v529 = vld [vmem:[#allocation10 + $0x78] sm:$0xff]
        %530 = vmatpush.msra.mxu0 %v529
        %531 = vmatpush.msra.mxu0 %v528
        %532 = vmatpush.msra.mxu0 %v527
        %533 = vmatpush.msra.mxu0 %v526
        %534 = vmatpush.msra.mxu0 %v525
        %535 = vmatpush.msra.mxu0 %v524
        %536 = vmatpush.msra.mxu0 %v523
        %537 = vmatpush.msra.mxu0 %v522
        %538 = vmatpush.msra.mxu0 %v521
        %539 = vmatpush.msra.mxu0 %v520
        %540 = vmatpush.msra.mxu0 %v519
        %541 = vmatpush.msra.mxu0 %v518
        %542 = vmatpush.msra.mxu0 %v517
        %543 = vmatpush.msra.mxu0 %v516
        %544 = vmatpush.msra.mxu0 %v515
        %545 = vmatpush.msra.mxu0 %v514
        %546 = vmatmul.f32.gmra.mxu0 %v513
        %v547 = vpop.f32.mrf.mxu0
        %v548 = vadd.f32 0.0, %v547
        %549 = vdwg.mxu0
        %v550 = vadd.f32 %v512, %v548
        %551 = vst [vmem:[#allocation4] sm:$0xff] %v550
        %v552 = vld [vmem:[#allocation4] sm:$0xff]
        %v553 = vld [vmem:[#allocation3 + $0x7] sm:$0xff]
        %s554 = scalar_lea.vmem [#allocation10], 128
        %v555 = vld [vmem:[%s554] sm:$0xff]
        %v556 = vld [vmem:[%s554 + $0x8] sm:$0xff]
        %v557 = vld [vmem:[%s554 + $0x10] sm:$0xff]
        %v558 = vld [vmem:[%s554 + $0x18] sm:$0xff]
        %v559 = vld [vmem:[%s554 + $0x20] sm:$0xff]
        %v560 = vld [vmem:[%s554 + $0x28] sm:$0xff]
        %v561 = vld [vmem:[%s554 + $0x30] sm:$0xff]
        %v562 = vld [vmem:[%s554 + $0x38] sm:$0xff]
        %v563 = vld [vmem:[%s554 + $0x40] sm:$0xff]
        %v564 = vld [vmem:[%s554 + $0x48] sm:$0xff]
        %v565 = vld [vmem:[%s554 + $0x50] sm:$0xff]
        %v566 = vld [vmem:[%s554 + $0x58] sm:$0xff]
        %v567 = vld [vmem:[%s554 + $0x60] sm:$0xff]
        %v568 = vld [vmem:[%s554 + $0x68] sm:$0xff]
        %v569 = vld [vmem:[%s554 + $0x70] sm:$0xff]
        %v570 = vld [vmem:[%s554 + $0x78] sm:$0xff]
        %571 = vmatpush.msra.mxu0 %v570
        %572 = vmatpush.msra.mxu0 %v569
        %573 = vmatpush.msra.mxu0 %v568
        %574 = vmatpush.msra.mxu0 %v567
        %575 = vmatpush.msra.mxu0 %v566
        %576 = vmatpush.msra.mxu0 %v565
        %577 = vmatpush.msra.mxu0 %v564
        %578 = vmatpush.msra.mxu0 %v563
        %579 = vmatpush.msra.mxu0 %v562
        %580 = vmatpush.msra.mxu0 %v561
        %581 = vmatpush.msra.mxu0 %v560
        %582 = vmatpush.msra.mxu0 %v559
        %583 = vmatpush.msra.mxu0 %v558
        %584 = vmatpush.msra.mxu0 %v557
        %585 = vmatpush.msra.mxu0 %v556
        %586 = vmatpush.msra.mxu0 %v555
        %587 = vmatmul.f32.gmra.mxu0 %v553
        %v588 = vpop.f32.mrf.mxu0
        %v589 = vadd.f32 0.0, %v588
        %590 = vdwg.mxu0
        %v591 = vadd.f32 %v552, %v589
        %592 = vst [vmem:[#allocation4] sm:$0xff] %v591
        %v593 = vld [vmem:[#allocation4] sm:$0xff]
        %v594 = vld [vmem:[#allocation3 + $0x8] sm:$0xff]
        %s595 = scalar_lea.vmem [#allocation10], 256
        %v596 = vld [vmem:[%s595] sm:$0xff]
        %v597 = vld [vmem:[%s595 + $0x8] sm:$0xff]
        %v598 = vld [vmem:[%s595 + $0x10] sm:$0xff]
        %v599 = vld [vmem:[%s595 + $0x18] sm:$0xff]
        %v600 = vld [vmem:[%s595 + $0x20] sm:$0xff]
        %v601 = vld [vmem:[%s595 + $0x28] sm:$0xff]
        %v602 = vld [vmem:[%s595 + $0x30] sm:$0xff]
        %v603 = vld [vmem:[%s595 + $0x38] sm:$0xff]
        %v604 = vld [vmem:[%s595 + $0x40] sm:$0xff]
        %v605 = vld [vmem:[%s595 + $0x48] sm:$0xff]
        %v606 = vld [vmem:[%s595 + $0x50] sm:$0xff]
        %v607 = vld [vmem:[%s595 + $0x58] sm:$0xff]
        %v608 = vld [vmem:[%s595 + $0x60] sm:$0xff]
        %v609 = vld [vmem:[%s595 + $0x68] sm:$0xff]
        %v610 = vld [vmem:[%s595 + $0x70] sm:$0xff]
        %v611 = vld [vmem:[%s595 + $0x78] sm:$0xff]
        %612 = vmatpush.msra.mxu0 %v611
        %613 = vmatpush.msra.mxu0 %v610
        %614 = vmatpush.msra.mxu0 %v609
        %615 = vmatpush.msra.mxu0 %v608
        %616 = vmatpush.msra.mxu0 %v607
        %617 = vmatpush.msra.mxu0 %v606
        %618 = vmatpush.msra.mxu0 %v605
        %619 = vmatpush.msra.mxu0 %v604
        %620 = vmatpush.msra.mxu0 %v603
        %621 = vmatpush.msra.mxu0 %v602
        %622 = vmatpush.msra.mxu0 %v601
        %623 = vmatpush.msra.mxu0 %v600
        %624 = vmatpush.msra.mxu0 %v599
        %625 = vmatpush.msra.mxu0 %v598
        %626 = vmatpush.msra.mxu0 %v597
        %627 = vmatpush.msra.mxu0 %v596
        %628 = vmatmul.f32.gmra.mxu0 %v594
        %v629 = vpop.f32.mrf.mxu0
        %v630 = vadd.f32 0.0, %v629
        %631 = vdwg.mxu0
        %v632 = vadd.f32 %v593, %v630
        %633 = vst [vmem:[#allocation4] sm:$0xff] %v632
        %v634 = vld [vmem:[#allocation4] sm:$0xff]
        %v635 = vld [vmem:[%s4] sm:$0x1]
        %v637 = vperm.slane %v635, 0
        %v639 = vadd.f32 %v634, %v637
        %v640 = vmax.f32 %v639, 0.0
        %641 = vst [vmem:[#allocation4] sm:$0xff] %v640
        %v642 = vld [vmem:[#allocation4] sm:$0xff]
        %v643 = vld [vmem:[%s317] sm:$0xff]
        %v644 = vld [vmem:[#allocation11] sm:$0xff]
        %v645 = vld [vmem:[#allocation11 + $0x8] sm:$0xff]
        %v646 = vld [vmem:[#allocation11 + $0x10] sm:$0xff]
        %v647 = vld [vmem:[#allocation11 + $0x18] sm:$0xff]
        %v648 = vld [vmem:[#allocation11 + $0x20] sm:$0xff]
        %v649 = vld [vmem:[#allocation11 + $0x28] sm:$0xff]
        %v650 = vld [vmem:[#allocation11 + $0x30] sm:$0xff]
        %v651 = vld [vmem:[#allocation11 + $0x38] sm:$0xff]
        %v652 = vld [vmem:[#allocation11 + $0x40] sm:$0xff]
        %v653 = vld [vmem:[#allocation11 + $0x48] sm:$0xff]
        %v654 = vld [vmem:[#allocation11 + $0x50] sm:$0xff]
        %v655 = vld [vmem:[#allocation11 + $0x58] sm:$0xff]
        %v656 = vld [vmem:[#allocation11 + $0x60] sm:$0xff]
        %v657 = vld [vmem:[#allocation11 + $0x68] sm:$0xff]
        %v658 = vld [vmem:[#allocation11 + $0x70] sm:$0xff]
        %v659 = vld [vmem:[#allocation11 + $0x78] sm:$0xff]
        %660 = vmatpush.msra.mxu0 %v659
        %661 = vmatpush.msra.mxu0 %v658
        %662 = vmatpush.msra.mxu0 %v657
        %663 = vmatpush.msra.mxu0 %v656
        %664 = vmatpush.msra.mxu0 %v655
        %665 = vmatpush.msra.mxu0 %v654
        %666 = vmatpush.msra.mxu0 %v653
        %667 = vmatpush.msra.mxu0 %v652
        %668 = vmatpush.msra.mxu0 %v651
        %669 = vmatpush.msra.mxu0 %v650
        %670 = vmatpush.msra.mxu0 %v649
        %671 = vmatpush.msra.mxu0 %v648
        %672 = vmatpush.msra.mxu0 %v647
        %673 = vmatpush.msra.mxu0 %v646
        %674 = vmatpush.msra.mxu0 %v645
        %675 = vmatpush.msra.mxu0 %v644
        %676 = vmatmul.f32.gmra.mxu0 %v643
        %v677 = vpop.f32.mrf.mxu0
        %v678 = vadd.f32 0.0, %v677
        %679 = vdwg.mxu0
        %v680 = vadd.f32 %v642, %v678
        %681 = vst [vmem:[#allocation4] sm:$0xff] %v680
        %v682 = vld [vmem:[#allocation4] sm:$0xff]
        %v683 = vld [vmem:[%s6] sm:$0x1]
        %v685 = vperm.slane %v683, 0
        %v687 = vadd.f32 %v682, %v685
        %688 = vst [vmem:[#allocation4] sm:$0xff] %v687
        %v689 = vld [vmem:[#allocation4] sm:$0xff]
        %v690 = vmax.f32 %v689, 0.0
        %691 = vst [vmem:[%s363] sm:$0xff] %v690
        %s692 = sand.u32 %s202, 1
        %s693 = scalar_lea.sflag [#allocation7], %s692
        %s694 = sand.u32 %s202, 1
        %s695 = smul.addr %s694, 8
        %s696 = scalar_lea.vmem [#allocation13], %s695
        // Predicated region
        $region73: #{tpu_custom_call.1} parent=47 // pred_check
          %p697 = pneg %p212
        $region74: #{tpu_custom_call.1} parent=47 // pred_check_branch
          %699 = sbr.rel (%p697) target = $region76
        $region75: #{tpu_custom_call.1} parent=47 // pred_region
          %701 = vsyncadd %s693, 0
          %s702 = smul.addr %s30, 3
          %s703 = sadd.s32 %s31, %s702
          %s704 = smul.addr %s703, 8
          %s705 = scalar_lea.hbm %s7, %s704
          %s707 = sshll.u32 %s696, 4
          %s708 = int_to_ptr.vmem [resolvable:$true] %s707
          %s709 = sshll.u32 %s705, 4
          %s710 = int_to_ptr.hbm [resolvable:$true] %s709
          %712 = dma.vmem_to_hbm [thread:$0]  %s708, 128, %s710, %s693
        $region76: #{tpu_custom_call.1} parent=47 // pred_fallthru
          _
      $region48: #{tpu_custom_call.1} parent=5 // pred_fallthru
        _
      %p713 = scmp.le.s32.totalorder 2, %s21
      // Predicated region
      $region77: #{tpu_custom_call.1} parent=5 // pred_check
        %p714 = pneg %p713
      $region78: #{tpu_custom_call.1} parent=5 // pred_check_branch
        %716 = sbr.rel (%p714) target = $region80
      $region79: #{tpu_custom_call.1} parent=5 // pred_region
        %s717 = ssub.s32 %s21, 2
        // Predicated region
        $region81: #{tpu_custom_call.1} parent=79 // pred_check
          %p718 = pneg %p218
        $region82: #{tpu_custom_call.1} parent=79 // pred_check_branch
          %720 = sbr.rel (%p718) target = $region84
        $region83: #{tpu_custom_call.1} parent=79 // pred_region
          %s721 = sand.u32 %s203, 1
          %s722 = scalar_lea.sflag [#allocation7], %s721
          %s723 = sand.u32 %s203, 1
          %s724 = smul.addr %s723, 8
          %s725 = scalar_lea.vmem [#allocation13], %s724
          %727 = dma.done %s722, 128
        $region84: #{tpu_custom_call.1} parent=79 // pred_fallthru
          _
      $region80: #{tpu_custom_call.1} parent=5 // pred_fallthru
        _
    $region6: #{tpu_custom_call.1} parent=1 // loop_footer
      %s25 = sadd.s32 1, %s21
    $region7: #{tpu_custom_call.1} parent=1 // loop_footer_branch
      %20 = sbr.rel target = $region3
    $region8: #{tpu_custom_call.1} parent=1 // loop_exit
      _
    %728 = vsyncpa [#allocation6], 1
    %s729 = scalar_lea.sflag [#allocation6], 1
    %730 = vsyncpa %s729, 1
    %731 = vsyncpa [#allocation9], 1
    %732 = vsyncpa [#allocation12], 1
    %733 = vsyncpa [#allocation7], 1
    %s734 = scalar_lea.sflag [#allocation7], 1
    %735 = vsyncpa %s734, 1

</llo_original>
